<compile_context>
chip_gen: v7x
topology: tpu7x:2x2x1
jax: 0.10.0
libtpu: 0.0.40
codegen_flags: <defaults>
</compile_context>

<pallas_src>
import functools
import math

import jax
import jax.numpy as jnp
from jax.experimental import pallas as pl
from jax.experimental.pallas import tpu as pltpu

NUM_CLASS = 150
N_PAD = 256                      # next multiple of 128 >= 150 (lane-dense output)
NEG_SLOPE = 0.01                 # nn.LeakyReLU() default
MAX_TILE_M = 512                 # >= 85% of HBM roofline per measurements
WORKSET_BUDGET = 40 * 1024 * 1024   # design working-set budget (bytes)
VMEM_LIMIT = 48 * 1024 * 1024       # explicit scoped-VMEM limit (< v7x 64 MiB phys)


def _round_up(x, m):
    return ((x + m - 1) // m) * m


def _round_down(x, m):
    return (x // m) * m


# ---------------------------------------------------------------------------
# Tiling heuristics (pure Python, evaluated at trace time on static shapes).
# ---------------------------------------------------------------------------
def _simple_workset_bytes(tile_m, k):
    k_lanes = _round_up(k, 128)
    x_bytes = 2 * tile_m * k_lanes * 4            # f32 x tile, double-buffered
    w_bytes = 2 * _round_up(k, 16) * N_PAD * 2    # bf16 weight, double-buffered
    o_bytes = 2 * tile_m * N_PAD * 4              # f32 out tile, double-buffered
    return x_bytes + w_bytes + o_bytes


def _choose_tile_k(k, force_tile_k=None):
    """None => single-pass (full K per step); else the K tile (multiple of 128)."""
    if force_tile_k is not None:
        return _round_up(int(force_tile_k), 128)
    if _simple_workset_bytes(MAX_TILE_M, k) <= WORKSET_BUDGET:
        return None
    # K-tiled fallback: largest tile_k (multiple of 128) fitting the budget
    # at tile_m = MAX_TILE_M (out dbuf + f32 accumulator are the fixed cost).
    fixed = 2 * MAX_TILE_M * N_PAD * 4 + MAX_TILE_M * N_PAD * 4
    per_k = 2 * MAX_TILE_M * 4 + 2 * N_PAD * 2    # x dbuf + bf16 w dbuf, per K elem
    tile_k = _round_down(max((WORKSET_BUDGET - fixed) // per_k, 128), 128)
    return max(tile_k, 128)


def _choose_tile_m(m, k, tile_k):
    # VMEM-derived cap on tile_m.
    if tile_k is None:
        fixed = 2 * _round_up(k, 16) * N_PAD * 2
        per_row = 2 * _round_up(k, 128) * 4 + 2 * N_PAD * 4
    else:
        fixed = 2 * _round_up(tile_k, 16) * N_PAD * 2
        per_row = 2 * tile_k * 4 + 3 * N_PAD * 4   # x dbuf + out dbuf + acc
    cap = max(_round_down(max(WORKSET_BUDGET - fixed, 0) // per_row, 8), 8)
    cap = min(cap, MAX_TILE_M)
    if m <= 16:
        return min(_round_up(m, 8), cap)
    # >= 2 grid steps so the 'parallel' M axis can shard across v7x's 2 TCs,
    # and the last (masked) block wastes at most a handful of rows.
    n_tiles = max(pl.cdiv(m, cap), 2)
    tile_m = _round_up(pl.cdiv(m, n_tiles), 8)
    return min(tile_m, cap)


# ---------------------------------------------------------------------------
# Kernels
# ---------------------------------------------------------------------------
def _fc_leakyrelu_kernel(x_ref, w_ref, b_ref, o_ref):
    # x_ref: [tile_m, K] f32, w_ref: [K, N_PAD] bf16, b_ref: [1, N_PAD] f32
    y = jnp.dot(x_ref[...].astype(jnp.bfloat16), w_ref[...],
                preferred_element_type=jnp.float32)
    y = y + b_ref[...]
    # LeakyReLU (slope < 1): max(y, slope*y) — one VPU op instead of cmp+select.
    o_ref[...] = jnp.maximum(y, NEG_SLOPE * y)


def _fc_leakyrelu_ktiled_kernel(x_ref, w_ref, b_ref, o_ref, acc_ref):
    # x_ref: [tile_m, tile_k] f32, w_ref: [tile_k, N_PAD] bf16, acc_ref f32.
    k_step = pl.program_id(1)

    @pl.when(k_step == 0)
    def _init():
        acc_ref[...] = jnp.zeros_like(acc_ref)

    acc_ref[...] += jnp.dot(x_ref[...].astype(jnp.bfloat16), w_ref[...],
                            preferred_element_type=jnp.float32)

    @pl.when(k_step == pl.num_programs(1) - 1)
    def _finalize():
        y = acc_ref[...] + b_ref[...]
        o_ref[...] = jnp.maximum(y, NEG_SLOPE * y)


# ---------------------------------------------------------------------------
# Wrapper
# ---------------------------------------------------------------------------
def fused_fc_leakyrelu(x, w, b, *, force_tile_k=None):
    """y = LeakyReLU(x @ w + b) over the whole batch in one pallas_call.

    x: [M, K]     float32 (kept f32 in HBM; cast to bf16 inside the kernel)
    w: [K_w, 256] bfloat16 (transposed + zero-padded weight; K_w == K, or K
                  zero-padded to a multiple of tile_k for the K-tiled path)
    b: [1, 256]   float32 (zero-padded bias)
    Returns [M, 256] float32 (caller slices [:, :NUM_CLASS]).
    """
    m, k = x.shape
    k_w = w.shape[0]

    tile_k = _choose_tile_k(k, force_tile_k)
    if tile_k is None:
        assert k_w == k, "weight/forward K-tiling decisions disagree"
    else:
        assert k_w == _round_up(k, tile_k), "weight/forward K padding disagree"
        if k_w > k:
            # Zero-pad K so no K block reads out of bounds (only in the huge-K
            # fallback regime; fuses with upstream ops under jit).
            x = jnp.pad(x, ((0, 0), (0, k_w - k)))

    tile_m = _choose_tile_m(m, k, tile_k)
    grid_m = pl.cdiv(m, tile_m)

    if tile_k is None:
        grid = (grid_m,)
        in_specs = [
            pl.BlockSpec((tile_m, k), lambda i: (i, 0)),
            pl.BlockSpec((k, N_PAD), lambda i: (0, 0)),      # weight resident
            pl.BlockSpec((1, N_PAD), lambda i: (0, 0)),      # bias resident
        ]
        out_specs = pl.BlockSpec((tile_m, N_PAD), lambda i: (i, 0))
        scratch_shapes = []
        kernel = _fc_leakyrelu_kernel
        dims = ("parallel",)
    else:
        grid_k = k_w // tile_k
        grid = (grid_m, grid_k)
        in_specs = [
            pl.BlockSpec((tile_m, tile_k), lambda i, kk: (i, kk)),
            pl.BlockSpec((tile_k, N_PAD), lambda i, kk: (kk, 0)),
            pl.BlockSpec((1, N_PAD), lambda i, kk: (0, 0)),
        ]
        out_specs = pl.BlockSpec((tile_m, N_PAD), lambda i, kk: (i, 0))
        scratch_shapes = [pltpu.VMEM((tile_m, N_PAD), jnp.float32)]
        kernel = _fc_leakyrelu_ktiled_kernel
        dims = ("parallel", "arbitrary")

    x_itemsize = jnp.dtype(x.dtype).itemsize
    cost = pl.CostEstimate(
        flops=2 * m * k_w * N_PAD,
        transcendentals=0,
        bytes_accessed=m * k_w * x_itemsize + k_w * N_PAD * 2 + m * N_PAD * 4,
    )

    return pl.pallas_call(
        kernel,
        out_shape=jax.ShapeDtypeStruct((m, N_PAD), jnp.float32),
        grid_spec=pltpu.PrefetchScalarGridSpec(
            num_scalar_prefetch=0,
            grid=grid,
            in_specs=in_specs,
            out_specs=out_specs,
            scratch_shapes=scratch_shapes,
        ),
        compiler_params=pltpu.CompilerParams(
            dimension_semantics=dims,
            vmem_limit_bytes=VMEM_LIMIT,
        ),
        cost_estimate=cost,
    )(x, w, b)


def init_params(key, features, num_class=NUM_CLASS):
    """Deterministic init matching nn.Linear's default U(-1/sqrt(in), 1/sqrt(in))."""
    k_w, k_b = jax.random.split(key)
    bound = 1.0 / math.sqrt(features)
    weight = jax.random.uniform(
        k_w, (num_class, features), jnp.float32, minval=-bound, maxval=bound
    )
    bias = jax.random.uniform(
        k_b, (num_class,), jnp.float32, minval=-bound, maxval=bound
    )
    return {"weight": weight, "bias": bias}


def prepare_params(params, features, *, force_tile_k=None):
    """Hoisted once: transpose + zero-pad to a lane-dense bf16 weight slab."""
    tile_k = _choose_tile_k(features, force_tile_k)
    k_pad = features if tile_k is None else _round_up(features, tile_k)
    w_t = params["weight"].T.astype(jnp.bfloat16)            # [features, NUM_CLASS]
    w = jnp.zeros((k_pad, N_PAD), jnp.bfloat16).at[:features, :NUM_CLASS].set(w_t)
    b = jnp.zeros((1, N_PAD), jnp.float32).at[0, :NUM_CLASS].set(
        params["bias"].astype(jnp.float32)
    )
    return {"w": w, "b": b}


@functools.partial(
    jax.jit, static_argnames=("support_num", "query_num", "force_tile_k")
)
def object_classifier_forward(prepared, object_node_feat, *, support_num, query_num,
                              force_tile_k=None):
    """Mirror of ObejectClassifier.forward.

    object_node_feat: [tasks, 2*support_num + 2*query_num, features]
    Returns a list of 4 arrays, each [tasks * group_size, num_class].
    """
    tasks, num_nodes, features = object_node_feat.shape

    # One fused kernel over the whole batch (the 4 PyTorch slices exactly cover it).
    x = object_node_feat.reshape(-1, features)
    y = fused_fc_leakyrelu(x, prepared["w"], prepared["b"], force_tile_k=force_tile_k)

    # Single fused slice/reshape pass over the lane-dense [M, 256] slab (under jit).
    y = y[:, :NUM_CLASS].reshape(tasks, num_nodes, NUM_CLASS)
    subject_support_output = y[:, :support_num, :].reshape(-1, NUM_CLASS)
    object_support_output = y[:, support_num:2 * support_num, :].reshape(-1, NUM_CLASS)
    subject_query_output = y[
        :, 2 * support_num:2 * support_num + query_num, :
    ].reshape(-1, NUM_CLASS)
    object_query_output = y[:, 2 * support_num + query_num:, :].reshape(-1, NUM_CLASS)

    return [
        subject_support_output,
        object_support_output,
        subject_query_output,
        object_query_output,
    ]


# ---------------------------------------------------------------------------
# Reference (plain JAX, PyTorch semantics with bf16-rounded operands)
# ---------------------------------------------------------------------------
def reference_outputs(params, object_node_feat, support_num, query_num):
    tasks, num_nodes, features = object_node_feat.shape
    xb = object_node_feat.reshape(-1, features).astype(jnp.bfloat16).astype(jnp.float32)
    wb = params["weight"].astype(jnp.bfloat16).astype(jnp.float32)
    b = params["bias"].astype(jnp.float32)
    y = xb @ wb.T + b
    y = jnp.where(y >= 0.0, y, NEG_SLOPE * y)
    y = y.reshape(tasks, num_nodes, NUM_CLASS)
    return [
        y[:, :support_num, :].reshape(-1, NUM_CLASS),
        y[:, support_num:2 * support_num, :].reshape(-1, NUM_CLASS),
        y[:, 2 * support_num:2 * support_num + query_num, :].reshape(-1, NUM_CLASS),
        y[:, 2 * support_num + query_num:, :].reshape(-1, NUM_CLASS),
    ]


if __name__ == "__main__":
    key = jax.random.PRNGKey(0)

    # ---------------- Case 1: small shapes, single-pass (no K tiling) path ----
    support_num, query_num, tasks, features = 3, 4, 2, 32
    num_nodes = 2 * support_num + 2 * query_num        # 14  -> M = 28, grid_m = 2

    key, k_params, k_x = jax.random.split(key, 3)
    params = init_params(k_params, features)
    prepared = prepare_params(params, features)
    object_node_feat = jax.random.normal(
        k_x, (tasks, num_nodes, features), jnp.float32
    )

    outs = object_classifier_forward(
        prepared, object_node_feat, support_num=support_num, query_num=query_num
    )
    outs = jax.block_until_ready(outs)

    expected_rows = [tasks * support_num, tasks * support_num,
                     tasks * query_num, tasks * query_num]
    refs = reference_outputs(params, object_node_feat, support_num, query_num)
    for o, rows, r in zip(outs, expected_rows, refs):
        assert o.shape == (rows, NUM_CLASS), o.shape
        assert o.dtype == jnp.float32
        assert jnp.allclose(o, r, atol=5e-3, rtol=5e-3)

    # ---------------- Case 2: force the K-tiled accumulator path --------------
    # features=320 with tile_k=128 -> K zero-padded to 384, 3 reduction steps.
    support_num2, query_num2, tasks2, features2 = 2, 2, 2, 320
    num_nodes2 = 2 * support_num2 + 2 * query_num2     # 8 -> M = 16

    key, k_params2, k_x2 = jax.random.split(key, 3)
    params2 = init_params(k_params2, features2)
    prepared2 = prepare_params(params2, features2, force_tile_k=128)
    object_node_feat2 = jax.random.normal(
        k_x2, (tasks2, num_nodes2, features2), jnp.float32
    )

    outs2 = object_classifier_forward(
        prepared2, object_node_feat2,
        support_num=support_num2, query_num=query_num2, force_tile_k=128
    )
    outs2 = jax.block_until_ready(outs2)

    expected_rows2 = [tasks2 * support_num2, tasks2 * support_num2,
                      tasks2 * query_num2, tasks2 * query_num2]
    refs2 = reference_outputs(params2, object_node_feat2, support_num2, query_num2)
    for o, rows, r in zip(outs2, expected_rows2, refs2):
        assert o.shape == (rows, NUM_CLASS), o.shape
        assert o.dtype == jnp.float32
        assert jnp.allclose(o, r, atol=5e-3, rtol=5e-3)

    print("KERNEL_OK")
</pallas_src>

<mosaic_0001>
module attributes {stable_mosaic.version = 11 : i64} {
  func.func @_fc_leakyrelu_kernel(%arg0: i32, %arg1: memref<16x32xf32, #tpu.memory_space<vmem>>, %arg2: memref<32x256xbf16, #tpu.memory_space<vmem>>, %arg3: memref<1x256xf32, #tpu.memory_space<vmem>>, %arg4: memref<16x256xf32, #tpu.memory_space<vmem>>) attributes {dimension_semantics = [#tpu.dimension_semantics<parallel>], iteration_bounds = array<i64: 2>, scalar_prefetch = 0 : i64, scratch_operands = 0 : i64, tpu.core_type = #tpu.core_type<tc>, window_params = [{transform_indices = @transform_0, window_bounds = array<i64: 16, 32>}, {pipeline_mode = #tpu.pipeline_mode<synchronous>, transform_indices = @transform_1, window_bounds = array<i64: 32, 256>}, {pipeline_mode = #tpu.pipeline_mode<synchronous>, transform_indices = @transform_2, window_bounds = array<i64: 1, 256>}, {transform_indices = @transform_3, window_bounds = array<i64: 16, 256>}]} {
    %c0 = arith.constant 0 : index
    %c0_0 = arith.constant 0 : index
    %0 = vector.load %arg1[%c0, %c0_0] : memref<16x32xf32, #tpu.memory_space<vmem>>, vector<16x32xf32>
    %1 = arith.truncf %0 : vector<16x32xf32> to vector<16x32xbf16>
    %c0_1 = arith.constant 0 : index
    %c0_2 = arith.constant 0 : index
    %2 = vector.load %arg2[%c0_1, %c0_2] : memref<32x256xbf16, #tpu.memory_space<vmem>>, vector<32x256xbf16>
    %cst = arith.constant dense<0.000000e+00> : vector<16x256xf32>
    %3 = tpu.matmul %1, %2, %cst {dimension_numbers = #tpu.dot_dimension_numbers<[1], [0], [0], [1], [0, 0, 1, 1], [], []>} : vector<16x32xbf16>, vector<32x256xbf16>, vector<16x256xf32> -> vector<16x256xf32>
    %c0_3 = arith.constant 0 : index
    %c0_4 = arith.constant 0 : index
    %4 = vector.load %arg3[%c0_3, %c0_4] : memref<1x256xf32, #tpu.memory_space<vmem>>, vector<1x256xf32>
    %5 = vector.broadcast %4 : vector<1x256xf32> to vector<16x256xf32>
    %6 = arith.addf %3, %5 : vector<16x256xf32>
    %cst_5 = arith.constant 0.00999999977 : f32
    %7 = vector.broadcast %cst_5 : f32 to vector<16x256xf32>
    %8 = arith.mulf %7, %6 : vector<16x256xf32>
    %9 = arith.maximumf %6, %8 : vector<16x256xf32>
    %c0_6 = arith.constant 0 : index
    %c0_7 = arith.constant 0 : index
    %10 = vector.load %arg4[%c0_6, %c0_7] : memref<16x256xf32, #tpu.memory_space<vmem>>, vector<16x256xf32>
    tpu.vector_store %arg4[%c0_6, %c0_7], %9 {strides = array<i32>} : memref<16x256xf32, #tpu.memory_space<vmem>>, vector<16x256xf32>,
    return
  }
  func.func @transform_0(%arg0: i32) -> (i32, i32) {
    %c0_i32 = arith.constant 0 : i32
    %c0_i32_0 = arith.constant 0 : i32
    return %arg0, %c0_i32 : i32, i32
  }
  func.func @transform_1(%arg0: i32) -> (i32, i32) {
    %c0_i32 = arith.constant 0 : i32
    %c0_i32_0 = arith.constant 0 : i32
    %c0_i32_1 = arith.constant 0 : i32
    return %c0_i32, %c0_i32_0 : i32, i32
  }
  func.func @transform_2(%arg0: i32) -> (i32, i32) {
    %c0_i32 = arith.constant 0 : i32
    %c0_i32_0 = arith.constant 0 : i32
    %c0_i32_1 = arith.constant 0 : i32
    return %c0_i32, %c0_i32_0 : i32, i32
  }
  func.func @transform_3(%arg0: i32) -> (i32, i32) {
    %c0_i32 = arith.constant 0 : i32
    %c0_i32_0 = arith.constant 0 : i32
    return %arg0, %c0_i32 : i32, i32
  }
}

</mosaic_0001>

<llo_original>
// kernel: object_classifier_forward.1
$region0: #{object_classifier_forward.1}
  #allocation0 [shape = 'u32[]', space=smem, size = 0x4, offset = 0x4, fixed_abs, tag = 'smem constant byte address 0x4 - core index']
  #allocation1 [shape = 'u32[144,128]{1,0:T(1,128)}', space=vmem, size = 0x12000, scoped, tag = 'internal scratch']
  %s0 = inlined_call_operand.vmem [shape: f32[28,32], index: 0, kind: input, shape index: {}]
  %s1 = inlined_call_operand.vmem [shape: bf16[32,256], index: 1, kind: input, shape index: {}]
  %s2 = inlined_call_operand.vmem [shape: f32[1,256], index: 2, kind: input, shape index: {}]
  %s3 = inlined_call_operand.vmem [shape: f32[28,256], index: 3, kind: output, shape index: {}]
  %s4 = sld [smem:[#allocation0]]
  $region45: #{object_classifier_forward.1} parent=0
    _
  %s6 = ssub.s32 1, %s4
  %s7 = scalar_select 0, %s6, %s4
  loop: start=0, step=1, limit=4
  $region2: #{object_classifier_forward.1} parent=0 // loop_pre_header
    _
  $region3: #{object_classifier_forward.1} parent=0 // loop_header
    %s9 = sphi 0, %s13
    %p10 = scmp.ge.s32.totalorder %s9, 4
    %s19 = sphi 0, %s21
    %s22 = sphi 0, %s19
    %s23 = sphi 0, %s22
    %s39 = sphi 0, %s23
    %s43 = sphi 0, %s43
    %s45 = sphi 0, %s43
    %s46 = sphi 0, %s45
    %s60 = sphi 0, %s46
    %s64 = sphi 0, %s64
    %s66 = sphi 0, %s64
    %s67 = sphi 0, %s66
    %s81 = sphi 0, %s67
    %s87 = sphi 0, %s89
    %s90 = sphi 0, %s87
    %s91 = sphi 0, %s90
    %s107 = sphi 0, %s91
  $region4: #{object_classifier_forward.1} parent=0 // loop_header_branch
    %12 = sbr.rel (%p10) target = $region8
  $region5: #{object_classifier_forward.1} parent=0 // loop_body
    %s14 = ssub.s32 %s9, 1
    %s15 = ssub.s32 %s9, 2
    %s16 = sadd.s32 %s9, 1
    %s17 = ssub.s32 %s9, %s16
    %p18 = scmp.eq.s32.totalorder %s17, 0
    %s20 = sadd.s32 %s19, 1
    %s21 = scalar_select %p18, %s19, %s20
    %p24 = pneg %p18
    %p25 = scmp.eq.s32.totalorder %s9, 1
    %p26 = por %p24, %p25
    %p27 = scmp.ne.s32.totalorder %s19, %s22
    %p28 = scmp.eq.s32.totalorder %s9, 0
    %p29 = por %p27, %p28
    %p30 = scmp.ne.s32.totalorder %s19, %s22
    %p31 = scmp.eq.s32.totalorder %s14, 1
    %p32 = por %p30, %p31
    %p33 = scmp.ne.s32.totalorder %s22, %s23
    %p34 = scmp.eq.s32.totalorder %s14, 0
    %p35 = por %p33, %p34
    %p36 = scmp.ne.s32.totalorder %s22, %s23
    %p37 = scmp.eq.s32.totalorder %s15, 1
    %p38 = por %p36, %p37
    %p40 = scmp.ne.s32.totalorder %s23, %s39
    %p41 = scmp.eq.s32.totalorder %s15, 0
    %p42 = por %p40, %p41
    %s44 = sadd.s32 %s43, 1
    %p47 = scmp.eq.s32.totalorder %s9, 1
    %p48 = scmp.ne.s32.totalorder %s43, %s45
    %p49 = scmp.eq.s32.totalorder %s9, 0
    %p50 = por %p48, %p49
    %p51 = scmp.ne.s32.totalorder %s43, %s45
    %p52 = scmp.eq.s32.totalorder %s14, 1
    %p53 = por %p51, %p52
    %p54 = scmp.ne.s32.totalorder %s45, %s46
    %p55 = scmp.eq.s32.totalorder %s14, 0
    %p56 = por %p54, %p55
    %p57 = scmp.ne.s32.totalorder %s45, %s46
    %p58 = scmp.eq.s32.totalorder %s15, 1
    %p59 = por %p57, %p58
    %p61 = scmp.ne.s32.totalorder %s46, %s60
    %p62 = scmp.eq.s32.totalorder %s15, 0
    %p63 = por %p61, %p62
    %s65 = sadd.s32 %s64, 1
    %p68 = scmp.eq.s32.totalorder %s9, 1
    %p69 = scmp.ne.s32.totalorder %s64, %s66
    %p70 = scmp.eq.s32.totalorder %s9, 0
    %p71 = por %p69, %p70
    %p72 = scmp.ne.s32.totalorder %s64, %s66
    %p73 = scmp.eq.s32.totalorder %s14, 1
    %p74 = por %p72, %p73
    %p75 = scmp.ne.s32.totalorder %s66, %s67
    %p76 = scmp.eq.s32.totalorder %s14, 0
    %p77 = por %p75, %p76
    %p78 = scmp.ne.s32.totalorder %s66, %s67
    %p79 = scmp.eq.s32.totalorder %s15, 1
    %p80 = por %p78, %p79
    %p82 = scmp.ne.s32.totalorder %s67, %s81
    %p83 = scmp.eq.s32.totalorder %s15, 0
    %p84 = por %p82, %p83
    %s85 = ssub.s32 %s9, %s16
    %p86 = scmp.eq.s32.totalorder %s85, 0
    %s88 = sadd.s32 %s87, 1
    %s89 = scalar_select %p86, %s87, %s88
    %p92 = pneg %p86
    %p93 = scmp.eq.s32.totalorder %s9, 1
    %p94 = por %p92, %p93
    %p95 = scmp.ne.s32.totalorder %s87, %s90
    %p96 = scmp.eq.s32.totalorder %s9, 0
    %p97 = por %p95, %p96
    %p98 = scmp.ne.s32.totalorder %s87, %s90
    %p99 = scmp.eq.s32.totalorder %s14, 1
    %p100 = por %p98, %p99
    %p101 = scmp.ne.s32.totalorder %s90, %s91
    %p102 = scmp.eq.s32.totalorder %s14, 0
    %p103 = por %p101, %p102
    %p104 = scmp.ne.s32.totalorder %s90, %s91
    %p105 = scmp.eq.s32.totalorder %s15, 1
    %p106 = por %p104, %p105
    %p108 = scmp.ne.s32.totalorder %s91, %s107
    %p109 = scmp.eq.s32.totalorder %s15, 0
    %p110 = por %p108, %p109
    %p111 = scmp.le.s32.totalorder 1, %s9
    %p112 = scmp.lt.s32.totalorder %s9, 3
    %p113 = pnand %p111, %p112
    %p114 = pneg %p113
    // Predicated region
    $region9: #{object_classifier_forward.1} parent=5 // pred_check
      _
    $region10: #{object_classifier_forward.1} parent=5 // pred_check_branch
      %116 = sbr.rel (%p113) target = $region12
    $region11: #{object_classifier_forward.1} parent=5 // pred_region
      %s117 = ssub.s32 %s9, 1
      // Predicated region
      $region13: #{object_classifier_forward.1} parent=11 // pred_check
        %p118 = pneg %p56
      $region14: #{object_classifier_forward.1} parent=11 // pred_check_branch
        %120 = sbr.rel (%p118) target = $region16
      $region15: #{object_classifier_forward.1} parent=11 // pred_region
        _
      $region16: #{object_classifier_forward.1} parent=11 // pred_fallthru
        _
      // Predicated region
      $region17: #{object_classifier_forward.1} parent=11 // pred_check
        %p121 = pneg %p77
      $region18: #{object_classifier_forward.1} parent=11 // pred_check_branch
        %123 = sbr.rel (%p121) target = $region20
      $region19: #{object_classifier_forward.1} parent=11 // pred_region
        _
      $region20: #{object_classifier_forward.1} parent=11 // pred_fallthru
        _
    $region12: #{object_classifier_forward.1} parent=5 // pred_fallthru
      _
    %p124 = scmp.lt.s32.totalorder %s9, 2
    // Predicated region
    $region21: #{object_classifier_forward.1} parent=5 // pred_check
      %p125 = pneg %p124
    $region22: #{object_classifier_forward.1} parent=5 // pred_check_branch
      %127 = sbr.rel (%p125) target = $region24
    $region23: #{object_classifier_forward.1} parent=5 // pred_region
      // Predicated region
      $region25: #{object_classifier_forward.1} parent=23 // pred_check
        %p128 = pneg %p29
      $region26: #{object_classifier_forward.1} parent=23 // pred_check_branch
        %130 = sbr.rel (%p128) target = $region28
      $region27: #{object_classifier_forward.1} parent=23 // pred_region
        %s131 = smul.u32 2, %s9
        %p132 = scmp.lt.s32.totalorder %s131, 3
        %s133 = scalar_select %p132, %s131, 3
        %s134 = smul.addr %s133, 8
        %s135 = scalar_lea.vmem %s0, %s134
        %s136 = smul.u32 2, %s9
      $region28: #{object_classifier_forward.1} parent=23 // pred_fallthru
        _
    $region24: #{object_classifier_forward.1} parent=5 // pred_fallthru
      _
    %p137 = scmp.le.s32.totalorder 1, %s9
    %p138 = scmp.lt.s32.totalorder %s9, 3
    %p139 = pnand %p137, %p138
    %p140 = pneg %p139
    // Predicated region
    $region29: #{object_classifier_forward.1} parent=5 // pred_check
      _
    $region30: #{object_classifier_forward.1} parent=5 // pred_check_branch
      %142 = sbr.rel (%p139) target = $region32
    $region31: #{object_classifier_forward.1} parent=5 // pred_region
      %s143 = ssub.s32 %s9, 1
      %s144 = smul.u32 2, %s14
      %p145 = scmp.lt.s32.totalorder %s144, 3
      %s146 = scalar_select %p145, %s144, 3
      %s147 = smul.addr %s146, 8
      %s148 = scalar_lea.vmem %s0, %s147
      %p149 = pneg %p35
      %p150 = pneg %p32
      %p151 = pneg %p56
      %p152 = pneg %p53
      %p153 = pneg %p77
      %p154 = pneg %p74
      %p155 = pneg %p103
      %p156 = pneg %p100
      %s157 = smul.u32 2, %s14
      %p158 = scmp.lt.s32.totalorder %s157, 3
      %s159 = scalar_select %p158, %s157, 3
      %s160 = smul.addr %s159, 2
      %s161 = smul.addr %s160, 8
      %s162 = scalar_lea.vmem %s3, %s161
      %s163 = smul.u32 2, %s14
      %p164 = scmp.lt.s32.totalorder %s163, 3
      %s165 = scalar_select %p164, %s163, 3
      %s166 = smul.addr %s165, 8
      %s167 = scalar_lea.vmem %s0, %s166
      %s168 = smul.u32 2, %s14
      %s169 = smul.u32 2, %s14
      %p170 = scmp.lt.s32.totalorder %s169, 3
      %s171 = scalar_select %p170, %s169, 3
      %s172 = smul.addr %s171, 2
      %s173 = smul.addr %s172, 8
      %s174 = scalar_lea.vmem %s3, %s173
      %s175 = smul.u32 2, %s14
      %v177 = vld [vmem:[%s167] sm:$0xff]
      %v178 = vld [vmem:[%s167 + $0x8] sm:$0xff]
      %v179 = vpack.c.bf16 %v178, %v177
      %v180 = vld [vmem:[%s1] sm:$0xff]
      %v181 = vld [vmem:[%s1 + $0x8] sm:$0xff]
      %v182 = vld [vmem:[%s1 + $0x10] sm:$0xff]
      %v183 = vld [vmem:[%s1 + $0x18] sm:$0xff]
      %v184 = vld [vmem:[%s2] sm:$0x3]
      %v186 = vlaneseq
      %v187 = vshrl.u32 %v186, 7
      %v188 = vsub.s32 0, %v187
      %v189 = vrot.slane %v184, %v188
      %v190 = vlaneseq
      %v191 = vshrl.u32 %v190, 7
      %v192 = vsub.s32 1, %v191
      %v193 = vrot.slane %v184, %v192
      %v200 = vunpack.c.l.b16 %v180
      %v201 = vunpack.c.h.b16 %v180
      %v202 = vunpack.c.l.b16 %v181
      %v203 = vunpack.c.h.b16 %v181
      %v204 = vunpack.c.l.b16 %v182
      %v205 = vunpack.c.h.b16 %v182
      %v206 = vunpack.c.l.b16 %v183
      %v207 = vunpack.c.h.b16 %v183
      %v208 = vpack.c.b16 %v202, %v200
      %v209 = vpack.c.b16 %v203, %v201
      %v210 = vpack.c.b16 %v206, %v204
      %v211 = vpack.c.b16 %v207, %v205
      %vm216 = vcmask 261120
      %v218 = vsel %vm216, %v179, 0
      %220 = vmatprep.subr.bf16.mxu0 %v209
      %221 = vmatpush1.bf16.msra.mxu0 %v208
      %222 = vmatprep.subr.bf16.mxu0 %v211
      %223 = vmatpush1.bf16.msra.mxu0 %v210
      %224 = vmatprep.subr.bf16.mxu0 0
      %225 = vmatpush1.bf16.msra.mxu0 0
      %226 = vmatprep.subr.bf16.mxu0 0
      %227 = vmatpush1.bf16.msra.mxu0 0
      %228 = vmatprep.subr.bf16.mxu0 0
      %229 = vmatpush1.bf16.msra.mxu0 0
      %230 = vmatprep.subr.bf16.mxu0 0
      %231 = vmatpush1.bf16.msra.mxu0 0
      %232 = vmatprep.subr.bf16.mxu0 0
      %233 = vmatpush1.bf16.msra.mxu0 0
      %234 = vmatprep.subr.bf16.mxu0 0
      %235 = vmatpush1.bf16.msra.mxu0 0
      %236 = vmatprep.subr.bf16.mxu0 0
      %237 = vmatpush1.bf16.msra.mxu0 0
      %238 = vmatprep.subr.bf16.mxu0 0
      %239 = vmatpush1.bf16.msra.mxu0 0
      %240 = vmatprep.subr.bf16.mxu0 0
      %241 = vmatpush1.bf16.msra.mxu0 0
      %242 = vmatprep.subr.bf16.mxu0 0
      %243 = vmatpush1.bf16.msra.mxu0 0
      %244 = vmatprep.subr.bf16.mxu0 0
      %245 = vmatpush1.bf16.msra.mxu0 0
      %246 = vmatprep.subr.bf16.mxu0 0
      %247 = vmatpush1.bf16.msra.mxu0 0
      %248 = vmatprep.subr.bf16.mxu0 0
      %249 = vmatpush1.bf16.msra.mxu0 0
      %250 = vmatprep.subr.bf16.mxu0 0
      %251 = vmatpush1.bf16.msra.mxu0 0
      %252 = vmatprep.mubr.bf16.mxu0 0
      %253 = vmatmul.mubr.bf16.gmra.mrb[0].mxu0 %v218
      %v254 = vpop.f32.mrb[0].mxu0
      %v255 = vadd.f32 %v189, %v254
      %v256 = vpop.f32.mrb[0].mxu0
      %v257 = vadd.f32 %v193, %v256
      %v258 = vpop.f32.mrb[0].mxu0
      %v259 = vadd.f32 %v189, %v258
      %v260 = vpop.f32.mrb[0].mxu0
      %v261 = vadd.f32 %v193, %v260
      %262 = vdwg.mxu0
      %v263 = vmul.f32 %v255, 0.01
      %v264 = vmul.f32 %v257, 0.01
      %v265 = vmul.f32 %v259, 0.01
      %v266 = vmul.f32 %v261, 0.01
      %v267 = vmax.f32 %v255, %v263
      %v268 = vmax.f32 %v257, %v264
      %v269 = vmax.f32 %v259, %v265
      %v270 = vmax.f32 %v261, %v266
      %271 = vst [vmem:[%s174] sm:$0xff] %v267
      %272 = vst [vmem:[%s174 + $0x8] sm:$0xff] %v268
      %273 = vst [vmem:[%s174 + $0x10] sm:$0xff] %v269
      %274 = vst [vmem:[%s174 + $0x18] sm:$0xff] %v270
      %s275 = smul.u32 2, %s14
      %p276 = scmp.lt.s32.totalorder %s275, 3
      %s277 = scalar_select %p276, %s275, 3
      %s278 = smul.addr %s277, 2
      %s279 = smul.addr %s278, 8
      %s280 = scalar_lea.vmem %s3, %s279
      // Predicated region
      $region33: #{object_classifier_forward.1} parent=31 // pred_check
        %p281 = pneg %p100
      $region34: #{object_classifier_forward.1} parent=31 // pred_check_branch
        %283 = sbr.rel (%p281) target = $region36
      $region35: #{object_classifier_forward.1} parent=31 // pred_region
        %s284 = smul.u32 2, %s14
      $region36: #{object_classifier_forward.1} parent=31 // pred_fallthru
        _
    $region32: #{object_classifier_forward.1} parent=5 // pred_fallthru
      _
    %p285 = scmp.le.s32.totalorder 2, %s9
    // Predicated region
    $region37: #{object_classifier_forward.1} parent=5 // pred_check
      %p286 = pneg %p285
    $region38: #{object_classifier_forward.1} parent=5 // pred_check_branch
      %288 = sbr.rel (%p286) target = $region40
    $region39: #{object_classifier_forward.1} parent=5 // pred_region
      %s289 = ssub.s32 %s9, 2
      // Predicated region
      $region41: #{object_classifier_forward.1} parent=39 // pred_check
        %p290 = pneg %p106
      $region42: #{object_classifier_forward.1} parent=39 // pred_check_branch
        %292 = sbr.rel (%p290) target = $region44
      $region43: #{object_classifier_forward.1} parent=39 // pred_region
        %s293 = smul.u32 2, %s15
        %p294 = scmp.lt.s32.totalorder %s293, 3
        %s295 = scalar_select %p294, %s293, 3
        %s296 = smul.addr %s295, 2
        %s297 = smul.addr %s296, 8
        %s298 = scalar_lea.vmem %s3, %s297
      $region44: #{object_classifier_forward.1} parent=39 // pred_fallthru
        _
    $region40: #{object_classifier_forward.1} parent=5 // pred_fallthru
      _
  $region6: #{object_classifier_forward.1} parent=0 // loop_footer
    %s13 = sadd.s32 1, %s9
  $region7: #{object_classifier_forward.1} parent=0 // loop_footer_branch
    %8 = sbr.rel target = $region3
  $region8: #{object_classifier_forward.1} parent=0 // loop_exit
    _

</llo_original>
